<compile_context>
chip_gen: v6e
topology: v6e:2x2x1
jax: 0.10.0
libtpu: 0.0.40
codegen_flags: <defaults>
</compile_context>

<pallas_src>
import functools

import jax
import jax.numpy as jnp
from jax.experimental import pallas as pl
from jax.experimental.pallas import tpu as pltpu


def _rmsnorm_kernel(x_ref, w_ref, o_ref, *, eps: float):
    # x_ref: (tm, D) row tile; w_ref: (1, D) weight; o_ref: (tm, D) output.
    x = x_ref[...].astype(jnp.float32)                           # x.float()
    ms = jnp.mean(x * x, axis=-1, keepdims=True)                 # mean(x^2, -1)
    normed = (x * jax.lax.rsqrt(ms + eps)).astype(x_ref.dtype)   # .type_as(x)
    # weight * normed with PyTorch's promotion (weight is f32).
    o_ref[...] = (w_ref[...].astype(jnp.float32) *
                  normed.astype(jnp.float32)).astype(o_ref.dtype)


def _tpu_config():
    """(vmem_capacity_bytes, grid-sharding TensorCores). Conservative fallback."""
    vmem_cap = 128 << 20
    try:
        info = pltpu.get_tpu_info()
        vmem_cap = int(getattr(info, "vmem_capacity_bytes", vmem_cap))
    except Exception:
        pass
    # Heuristic: 64 MiB/TC parts (v7x) megacore-shard "parallel" grid axes
    # across 2 TensorCores; 128 MiB parts (v5e/v6e) have a single TC.
    megacore = vmem_cap <= (64 << 20)
    return vmem_cap, (2 if megacore else 1)


def _choose_tile_rows(rows: int, dim: int, in_bytes: int, out_bytes: int,
                      sublane: int, tile_budget: int, num_cores: int) -> int:
    """Largest row tile whose double-buffered in+out footprint fits the budget."""
    per_row = 2 * dim * (in_bytes + out_bytes)       # 2 bufs each for x, out
    tm = max(1, tile_budget // per_row)
    tm = min(tm, 2048, rows)
    if rows < sublane:
        return rows                                   # block == full rows: legal
    tm = max(sublane, (tm // sublane) * sublane)      # dtype-packed sublanes
    if num_cores > 1 and rows > sublane:
        # Megacore (v7x): keep >= 2 tiles per TensorCore for load balance.
        min_tiles = 2 * num_cores
        if pl.cdiv(rows, tm) < min_tiles:
            target = -(-rows // min_tiles)            # ceil(rows / min_tiles)
            target = max(sublane,
                         ((target + sublane - 1) // sublane) * sublane)
            tm = min(tm, target)
    return max(tm, 1)


def rmsnorm(x: jax.Array, weight: jax.Array, eps: float = 1e-6,
            out_dtype=None) -> jax.Array:
    """RMSNorm over the last axis of x, scaled by `weight` (shape (dim,)).

    out_dtype=None reproduces PyTorch's promotion (f32 weight * x-dtype normed
    -> promoted dtype). Pass out_dtype=x.dtype to halve output HBM traffic for
    bf16 activations (opt-in; diverges from strict PyTorch promotion).
    """
    orig_shape = x.shape
    dim = orig_shape[-1]
    rows = 1
    for s in orig_shape[:-1]:
        rows *= s

    x2d = x.reshape(rows, dim)
    w2d = weight.reshape(1, dim)

    if out_dtype is None:
        out_dtype = jnp.promote_types(x.dtype, weight.dtype)
    in_bytes = jnp.dtype(x.dtype).itemsize
    out_bytes = jnp.dtype(out_dtype).itemsize
    w_bytes = jnp.dtype(weight.dtype).itemsize

    # Sublane packing of the input dtype: f32 -> 8, bf16/f16 -> 16, int8 -> 32.
    sublane = max(8, 32 // max(in_bytes, 1))

    vmem_cap, num_cores = _tpu_config()
    # Headroom for Mosaic internal scratch / semaphores / weight buffers.
    vmem_limit_cap = vmem_cap - (16 << 20)            # v7x: 48 MiB, v5e/v6e: 112 MiB
    tile_budget = (28 << 20) if vmem_cap <= (64 << 20) else (48 << 20)

    tm = _choose_tile_rows(rows, dim, in_bytes, out_bytes, sublane,
                           tile_budget, num_cores)
    num_tiles = pl.cdiv(rows, tm)                     # ragged last block is OK:
                                                      # OOB writes are masked and
                                                      # rows are independent.

    tile_bytes = 2 * tm * dim * (in_bytes + out_bytes) + 2 * dim * w_bytes
    vmem_limit = min(max(int(tile_bytes * 1.25) + (4 << 20), 32 << 20),
                     vmem_limit_cap)

    cost = pl.CostEstimate(
        flops=3 * rows * dim,                         # square, mean-acc, scale
        transcendentals=rows,                         # one rsqrt per row
        bytes_accessed=rows * dim * (in_bytes + out_bytes) + dim * w_bytes,
    )

    out2d = pl.pallas_call(
        functools.partial(_rmsnorm_kernel, eps=eps),
        out_shape=jax.ShapeDtypeStruct((rows, dim), out_dtype),
        grid_spec=pltpu.PrefetchScalarGridSpec(
            num_scalar_prefetch=0,
            grid=(num_tiles,),
            in_specs=[
                pl.BlockSpec((tm, dim), lambda i: (i, 0)),    # x row tile
                pl.BlockSpec((1, dim), lambda i: (0, 0)),     # weight (reused)
            ],
            out_specs=pl.BlockSpec((tm, dim), lambda i: (i, 0)),
        ),
        compiler_params=pltpu.CompilerParams(
            dimension_semantics=("parallel",),
            vmem_limit_bytes=vmem_limit,
        ),
        cost_estimate=cost,
    )(x2d, w2d)

    return out2d.reshape(orig_shape)


if __name__ == "__main__":
    key = jax.random.PRNGKey(0)
    batch, seq, hidden = 2, 8, 32

    x = jax.random.normal(key, (batch, seq, hidden), dtype=jnp.float32)
    # Deterministic parameter init, matching nn.Parameter(torch.ones(dim)).
    weight = jnp.ones((hidden,), dtype=jnp.float32)
    eps = 1e-6

    out = rmsnorm(x, weight, eps)
    out = jax.block_until_ready(out)

    # Reference check in plain JAX (same math as the PyTorch module).
    xf = x.astype(jnp.float32)
    ref = weight * (xf * jax.lax.rsqrt(
        jnp.mean(xf * xf, axis=-1, keepdims=True) + eps)).astype(x.dtype)
    assert out.shape == x.shape
    assert jnp.allclose(out, ref, atol=1e-5, rtol=1e-5), "mismatch vs reference"

    print("KERNEL_OK")
</pallas_src>

<mosaic_0001>
module attributes {stable_mosaic.version = 11 : i64} {
  func.func @_rmsnorm_kernel(%arg0: i32, %arg1: memref<16x32xf32, #tpu.memory_space<vmem>>, %arg2: memref<1x32xf32, #tpu.memory_space<vmem>>, %arg3: memref<16x32xf32, #tpu.memory_space<vmem>>) attributes {dimension_semantics = [#tpu.dimension_semantics<parallel>], iteration_bounds = array<i64: 1>, scalar_prefetch = 0 : i64, scratch_operands = 0 : i64, tpu.core_type = #tpu.core_type<tc>, window_params = [{transform_indices = @transform_0, window_bounds = array<i64: 16, 32>}, {pipeline_mode = #tpu.pipeline_mode<synchronous>, transform_indices = @transform_1, window_bounds = array<i64: 1, 32>}, {transform_indices = @transform_2, window_bounds = array<i64: 16, 32>}]} {
    %c0 = arith.constant 0 : index
    %c0_0 = arith.constant 0 : index
    %0 = vector.load %arg1[%c0, %c0_0] : memref<16x32xf32, #tpu.memory_space<vmem>>, vector<16x32xf32>
    %1 = arith.mulf %0, %0 : vector<16x32xf32>
    %cst = arith.constant dense<0.000000e+00> : vector<16xf32>
    %2 = vector.multi_reduction <add>, %1, %cst [1] : vector<16x32xf32> to vector<16xf32>
    %3 = vector.shape_cast %2 : vector<16xf32> to vector<16x1xf32>
    %cst_1 = arith.constant 3.200000e+01 : f32
    %4 = vector.broadcast %cst_1 : f32 to vector<16x1xf32>
    %5 = arith.divf %3, %4 : vector<16x1xf32>
    %cst_2 = arith.constant 9.99999997E-7 : f32
    %6 = vector.broadcast %cst_2 : f32 to vector<16x1xf32>
    %7 = arith.addf %5, %6 : vector<16x1xf32>
    %8 = math.rsqrt %7 : vector<16x1xf32>
    %9 = vector.broadcast %8 : vector<16x1xf32> to vector<16x32xf32>
    %10 = arith.mulf %0, %9 : vector<16x32xf32>
    %c0_3 = arith.constant 0 : index
    %c0_4 = arith.constant 0 : index
    %11 = vector.load %arg2[%c0_3, %c0_4] : memref<1x32xf32, #tpu.memory_space<vmem>>, vector<1x32xf32>
    %12 = vector.broadcast %11 : vector<1x32xf32> to vector<16x32xf32>
    %13 = arith.mulf %12, %10 : vector<16x32xf32>
    %c0_5 = arith.constant 0 : index
    %c0_6 = arith.constant 0 : index
    %14 = vector.load %arg3[%c0_5, %c0_6] : memref<16x32xf32, #tpu.memory_space<vmem>>, vector<16x32xf32>
    tpu.vector_store %arg3[%c0_5, %c0_6], %13 {strides = array<i32>} : memref<16x32xf32, #tpu.memory_space<vmem>>, vector<16x32xf32>,
    return
  }
  func.func @transform_0(%arg0: i32) -> (i32, i32) {
    %c0_i32 = arith.constant 0 : i32
    %c0_i32_0 = arith.constant 0 : i32
    return %arg0, %c0_i32 : i32, i32
  }
  func.func @transform_1(%arg0: i32) -> (i32, i32) {
    %c0_i32 = arith.constant 0 : i32
    %c0_i32_0 = arith.constant 0 : i32
    %c0_i32_1 = arith.constant 0 : i32
    return %c0_i32, %c0_i32_0 : i32, i32
  }
  func.func @transform_2(%arg0: i32) -> (i32, i32) {
    %c0_i32 = arith.constant 0 : i32
    %c0_i32_0 = arith.constant 0 : i32
    return %arg0, %c0_i32 : i32, i32
  }
}

</mosaic_0001>

<llo_original>
// kernel: tpu_custom_call.1
$region0: #{tpu_custom_call.1}
  #allocation0 [shape = 'u32[]', space=smem, size = 0x4, offset = 0x4, fixed_abs, tag = 'smem constant byte address 0x4 - core index']
  #allocation1 [shape = 'u32[144,128]{1,0:T(1,128)}', space=vmem, size = 0x12000, scoped, tag = 'internal scratch']
  %s0 = inlined_call_operand.hbm [shape: f32[16,32], index: 0, kind: input, shape index: {}]
  %s1 = inlined_call_operand.vmem [shape: f32[1,32], index: 1, kind: input, shape index: {}]
  %s2 = inlined_call_operand.hbm [shape: f32[16,32], index: 2, kind: output, shape index: {}]
  %s3 = sld [smem:[#allocation0]]
  $region22: #{tpu_custom_call.1} parent=0
    _
  %s5 = ssub.s32 1, %s3
  %s6 = scalar_select 0, %s5, %s3
  $region1: #{tpu_custom_call.1} parent=0
    #allocation2 [shape = 'u8[8192]{0}', space=vmem, size = 0x2000, scoped, tag = 'input window, operand 0, single buffered']
    #allocation3 [shape = 's32[1]{0}', space=sflag, size = 0x4, scoped, tag = 'scoped memory for tpu_custom_call.1']
    #allocation4 [shape = 's32[1]{0}', space=sflag, size = 0x4, scoped, tag = 'scoped memory for tpu_custom_call.1']
    #allocation5 [shape = 'u8[8192]{0}', space=vmem, size = 0x2000, scoped, tag = 'output window, operand 0, single buffered']
    %7 = vsyncpa [#allocation3], 0
    %8 = vsyncpa [#allocation4], 0
    // Predicated region
    $region2: #{tpu_custom_call.1} parent=1 // pred_check
      _
    $region3: #{tpu_custom_call.1} parent=1 // pred_check_branch
      %10 = sbr.rel (0) target = $region5
    $region4: #{tpu_custom_call.1} parent=1 // pred_region
      %s12 = ssub.s32 256, 256
      %13 = vsyncadd [#allocation3], %s12
      %s14 = sshll.u32 [#allocation2], 4
      %s15 = int_to_ptr.vmem [resolvable:$true] %s14
      %20 = dma.hbm_to_vmem [thread:$0]  %s0, 256, %s15, [#allocation3], 128, 128, 8
    $region5: #{tpu_custom_call.1} parent=1 // pred_fallthru
      _
    // Predicated region
    $region6: #{tpu_custom_call.1} parent=1 // pred_check
      _
    $region7: #{tpu_custom_call.1} parent=1 // pred_check_branch
      %22 = sbr.rel (0) target = $region9
    $region8: #{tpu_custom_call.1} parent=1 // pred_region
      _
    $region9: #{tpu_custom_call.1} parent=1 // pred_fallthru
      _
    // Predicated region
    $region10: #{tpu_custom_call.1} parent=1 // pred_check
      _
    $region11: #{tpu_custom_call.1} parent=1 // pred_check_branch
      %24 = sbr.rel (0) target = $region13
    $region12: #{tpu_custom_call.1} parent=1 // pred_region
      %25 = dma.done [#allocation3], 256
    $region13: #{tpu_custom_call.1} parent=1 // pred_fallthru
      _
    %v26 = vld [vmem:[#allocation2] sm:$0xff]
    %v27 = vld [vmem:[#allocation2 + $0x8] sm:$0xff]
    %v28 = vmul.f32 %v26, %v26
    %v29 = vmul.f32 %v27, %v27
    %vm30 = vcmask 261120
    %v31 = vsel %vm30, %v28, 0.0
    %32 = vadd.xlane.f32.xlu0 %v31
    %v33 = vpop.xlane.xlu0 %32
    %v34 = vsel %vm30, %v29, 0.0
    %35 = vadd.xlane.f32.xlu0 %v34
    %v36 = vpop.xlane.xlu0 %35
    %v37 = vrcp.pop 32.0
    %v38 = vmul.f32 %v33, %v37
    %v39 = vmul.f32 %v36, %v37
    %v40 = vadd.f32 %v38, 1e-06
    %v41 = vadd.f32 %v39, 1e-06
    %v42 = vrsqrt.pop %v40
    %v43 = vrsqrt.pop %v41
    %v44 = vmul.f32 %v26, %v42
    %v45 = vmul.f32 %v27, %v43
    %v46 = vld [vmem:[%s1] sm:$0x1]
    %v48 = vlaneseq
    %v49 = vshrl.u32 %v48, 7
    %v50 = vsub.s32 0, %v49
    %v51 = vrot.slane %v46, %v50
    %v53 = vmul.f32 %v51, %v44
    %v54 = vmul.f32 %v51, %v45
    %55 = vst.msk [vmem:[#allocation5] sm:$0xff] %vm30, %v53
    %56 = vst.msk [vmem:[#allocation5 + $0x8] sm:$0xff] %vm30, %v54
    // Predicated region
    $region14: #{tpu_custom_call.1} parent=1 // pred_check
      _
    $region15: #{tpu_custom_call.1} parent=1 // pred_check_branch
      %58 = sbr.rel (0) target = $region17
    $region16: #{tpu_custom_call.1} parent=1 // pred_region
      %s60 = ssub.s32 256, 256
      %61 = vsyncadd [#allocation4], %s60
      %s62 = sshll.u32 [#allocation5], 4
      %s63 = int_to_ptr.vmem [resolvable:$true] %s62
      %68 = dma.vmem_to_hbm [thread:$0]  %s63, 256, %s2, [#allocation4], 128, 128, 8
    $region17: #{tpu_custom_call.1} parent=1 // pred_fallthru
      _
    // Predicated region
    $region18: #{tpu_custom_call.1} parent=1 // pred_check
      _
    $region19: #{tpu_custom_call.1} parent=1 // pred_check_branch
      %70 = sbr.rel (0) target = $region21
    $region20: #{tpu_custom_call.1} parent=1 // pred_region
      %71 = dma.done [#allocation4], 256
    $region21: #{tpu_custom_call.1} parent=1 // pred_fallthru
      _
    %72 = vsyncpa [#allocation3], 1
    %73 = vsyncpa [#allocation4], 1

</llo_original>
